<compile_context>
chip_gen: v5e
topology: v5e:2x2
jax: 0.10.0
libtpu: 0.0.40
codegen_flags: <defaults>
</compile_context>

<pallas_src>
import jax
import jax.numpy as jnp
from jax.experimental import pallas as pl
from jax.experimental.pallas import tpu as pltpu


def _vmem_capacity_bytes() -> int:
    """Per-core VMEM capacity; conservative (v7x, 64 MiB) fallback."""
    try:
        info = pltpu.get_tpu_info()
        cap = getattr(info, "vmem_capacity_bytes", None)
        if cap:
            return int(cap)
    except Exception:
        pass
    return 64 * 1024 * 1024


def _round_up(x: int, m: int) -> int:
    return ((x + m - 1) // m) * m


def _channel_loss_kernel(x_ref, out_ref, acc_ref):
    """One (batch, k-tile) grid step.

    x_ref:   (1, C, tk) VMEM tile of x for batch b = program_id(0)
    out_ref: (1, 1, 128) per-batch partial loss (broadcast across lanes)
    acc_ref: (C, C) f32 VMEM scratch — Gram-matrix accumulator
    """
    k = pl.program_id(1)
    nk = pl.num_programs(1)

    xt = x_ref[0]                                           # (C, tk), native dtype

    # Gram partial: contract the HW tile (last dim of BOTH operands) on the
    # MXU — A·Bᵀ form, no RHS transpose in the loop.  bf16 operands hit the
    # bf16-native MXU path; f32 accumulation via preferred_element_type.
    partial = jax.lax.dot_general(
        xt, xt,
        dimension_numbers=(((1,), (1,)), ((), ())),
        preferred_element_type=jnp.float32)                 # (C, C) f32

    @pl.when(k == 0)
    def _first():
        acc_ref[...] = partial                              # no zero-init + RMW

    @pl.when(k > 0)
    def _rest():
        acc_ref[...] += partial

    @pl.when(k == nk - 1)
    def _finalize():
        # NOTE: the /H/W scaling of `energy` cancels in energy / row_max
        # (positive constant), so it is omitted entirely.
        energy = acc_ref[...]                               # (C, C)
        row_max = jnp.max(energy, axis=-1, keepdims=True)   # (C, 1)
        inv = pl.reciprocal(row_max, approx=False)          # C reciprocals
        en = energy * inv                                   # (C, C) normalized

        # Cross-entropy with target[j] = j: softmax over rows i per column j.
        col_max = jnp.max(en, axis=0, keepdims=True)                        # (1, C)
        lse = jnp.log(jnp.sum(jnp.exp(en - col_max), axis=0,
                              keepdims=True)) + col_max                     # (1, C)

        # Diagonal extracted from the SAME accumulator used in the logsumexp
        # (consistent with the MXU/bf16 path): sum_j en[j, j].
        C = acc_ref.shape[0]
        rows = jax.lax.broadcasted_iota(jnp.int32, (C, C), 0)
        cols = jax.lax.broadcasted_iota(jnp.int32, (C, C), 1)
        diag_sum = jnp.sum(jnp.where(rows == cols, en, 0.0))

        loss_b = jnp.sum(lse) - diag_sum                    # partial sum over C cols
        out_ref[...] = jnp.full(out_ref.shape, loss_b, dtype=out_ref.dtype)


def channel_loss(x: jax.Array) -> jax.Array:
    """Pallas implementation of Channel_loss.forward. x: (B, C, H, W)."""
    B, C, H, W = x.shape
    hw = H * W
    xr = x.reshape(B, C, hw)
    # MXU-friendly dtypes only; bf16 stays bf16 (bf16-native MXU path).
    if xr.dtype not in (jnp.float32, jnp.bfloat16):
        xr = xr.astype(jnp.float32)
    itemsize = xr.dtype.itemsize

    # --- tk sizing from C and per-generation VMEM capacity -------------------
    vmem_cap = _vmem_capacity_bytes()
    budget = int(0.6 * vmem_cap)                 # kernel-buffer budget
    acc_bytes = C * C * 4                        # resident f32 Gram accumulator
    per_tk = 2 * C * itemsize                    # double-buffered input, per tk
    avail = budget - acc_bytes - (2 << 20)       # headroom (output + misc)
    tk_max = max(128, (max(avail, 0) // per_tk) // 128 * 128)
    tk = min(tk_max, _round_up(hw, 128))

    # Zero-pad HW to a multiple of tk: zeros contribute nothing to x·xᵀ, so no
    # in-kernel masking is needed and tk is decoupled from H*W divisibility.
    hw_pad = _round_up(hw, tk)
    if hw_pad != hw:
        xr = jnp.pad(xr, ((0, 0), (0, 0), (0, hw_pad - hw)))
    nk = hw_pad // tk

    # Scoped-VMEM limit: double-buffered input tile + accumulator + headroom,
    # capped below the physical per-core capacity (generation-aware).
    block_bytes = C * tk * itemsize
    vmem_limit = int(min(
        vmem_cap - 8 * 1024 * 1024,
        max(32 * 1024 * 1024, 2 * block_bytes + acc_bytes + (4 << 20)),
    ))

    out = pl.pallas_call(
        _channel_loss_kernel,
        out_shape=jax.ShapeDtypeStruct((B, 1, 128), jnp.float32),
        grid_spec=pltpu.PrefetchScalarGridSpec(
            num_scalar_prefetch=0,
            grid=(B, nk),
            in_specs=[pl.BlockSpec((1, C, tk), lambda b, k: (b, 0, k))],
            out_specs=pl.BlockSpec((1, 1, 128), lambda b, k: (b, 0, 0)),
            scratch_shapes=[pltpu.VMEM((C, C), jnp.float32)],
        ),
        compiler_params=pltpu.CompilerParams(
            dimension_semantics=("parallel", "arbitrary"),
            vmem_limit_bytes=vmem_limit,
        ),
    )(xr)

    per_batch = out[:, 0, 0]                                # (B,) partial sums over C
    return jnp.sum(per_batch) / (B * C)                     # mean over B*C elements


def channel_loss_ref(x: jax.Array) -> jax.Array:
    """Pure-JAX reference mirroring the PyTorch module."""
    B, C, H, W = x.shape
    xf = x.reshape(B, C, H * W).astype(jnp.float32)
    energy = jnp.einsum("bcn,bdn->bcd", xf, xf) / H / W
    en = energy / jnp.max(energy, axis=-1, keepdims=True)
    lse = jax.scipy.special.logsumexp(en, axis=1)           # over class dim (rows)
    diag = jnp.diagonal(en, axis1=1, axis2=2)
    return jnp.mean(lse - diag)


if __name__ == "__main__":
    key = jax.random.PRNGKey(0)
    B, C, H, W = 2, 4, 16, 16
    x = jax.random.normal(key, (B, C, H, W), dtype=jnp.float32)

    out = channel_loss(x)
    jax.block_until_ready(out)

    ref = channel_loss_ref(x)
    assert jnp.allclose(out, ref, rtol=1e-4, atol=1e-5), (out, ref)
    print("KERNEL_OK")
</pallas_src>

<mosaic_0001>
module attributes {stable_mosaic.version = 11 : i64} {
  func.func @_channel_loss_kernel(%arg0: i32, %arg1: i32, %arg2: memref<1x4x256xf32, #tpu.memory_space<vmem>>, %arg3: memref<1x1x128xf32, #tpu.memory_space<vmem>>, %arg4: memref<4x4xf32, #tpu.memory_space<vmem>>) attributes {dimension_semantics = [#tpu.dimension_semantics<parallel>, #tpu.dimension_semantics<arbitrary>], iteration_bounds = array<i64: 2, 1>, scalar_prefetch = 0 : i64, scratch_operands = 1 : i64, tpu.core_type = #tpu.core_type<tc>, window_params = [{transform_indices = @transform_0, window_bounds = array<i64: 1, 4, 256>}, {transform_indices = @transform_1, window_bounds = array<i64: 1, 1, 128>}]} {
    %c0 = arith.constant 0 : index
    %c0_0 = arith.constant 0 : index
    %c0_1 = arith.constant 0 : index
    %0 = vector.load %arg2[%c0, %c0_0, %c0_1] : memref<1x4x256xf32, #tpu.memory_space<vmem>>, vector<1x4x256xf32>
    %1 = vector.shape_cast %0 : vector<1x4x256xf32> to vector<4x256xf32>
    %cst = arith.constant dense<0.000000e+00> : vector<4x4xf32>
    %2 = tpu.matmul %1, %1, %cst {dimension_numbers = #tpu.dot_dimension_numbers<[1], [1], [0], [0], [0, 0, 1, 0], [], []>} : vector<4x256xf32>, vector<4x256xf32>, vector<4x4xf32> -> vector<4x4xf32>
    %c0_i32 = arith.constant 0 : i32
    %3 = arith.cmpi eq, %arg1, %c0_i32 : i32
    %4 = arith.extui %3 : i1 to i32
    %c0_i32_2 = arith.constant 0 : i32
    %5 = arith.cmpi ne, %4, %c0_i32_2 : i32
    scf.if %5 {
      %c0_7 = arith.constant 0 : index
      %c0_8 = arith.constant 0 : index
      %12 = vector.load %arg4[%c0_7, %c0_8] : memref<4x4xf32, #tpu.memory_space<vmem>>, vector<4x4xf32>
      tpu.vector_store %arg4[%c0_7, %c0_8], %2 {strides = array<i32>} : memref<4x4xf32, #tpu.memory_space<vmem>>, vector<4x4xf32>,
    } else {
    }
    %c0_i32_3 = arith.constant 0 : i32
    %6 = arith.cmpi sgt, %arg1, %c0_i32_3 : i32
    %7 = arith.extui %6 : i1 to i32
    %c0_i32_4 = arith.constant 0 : i32
    %8 = arith.cmpi ne, %7, %c0_i32_4 : i32
    scf.if %8 {
      %c0_7 = arith.constant 0 : index
      %c0_8 = arith.constant 0 : index
      %12 = vector.load %arg4[%c0_7, %c0_8] : memref<4x4xf32, #tpu.memory_space<vmem>>, vector<4x4xf32>
      %13 = arith.addf %12, %2 : vector<4x4xf32>
      %c0_9 = arith.constant 0 : index
      %c0_10 = arith.constant 0 : index
      %14 = vector.load %arg4[%c0_9, %c0_10] : memref<4x4xf32, #tpu.memory_space<vmem>>, vector<4x4xf32>
      tpu.vector_store %arg4[%c0_9, %c0_10], %13 {strides = array<i32>} : memref<4x4xf32, #tpu.memory_space<vmem>>, vector<4x4xf32>,
    } else {
    }
    %c0_i32_5 = arith.constant 0 : i32
    %9 = arith.cmpi eq, %arg1, %c0_i32_5 : i32
    %10 = arith.extui %9 : i1 to i32
    %c0_i32_6 = arith.constant 0 : i32
    %11 = arith.cmpi ne, %10, %c0_i32_6 : i32
    scf.if %11 {
      %c0_7 = arith.constant 0 : index
      %c0_8 = arith.constant 0 : index
      %12 = vector.load %arg4[%c0_7, %c0_8] : memref<4x4xf32, #tpu.memory_space<vmem>>, vector<4x4xf32>
      %cst_9 = arith.constant dense<0xFF800000> : vector<4xf32>
      %13 = vector.multi_reduction <maximumf>, %12, %cst_9 [1] : vector<4x4xf32> to vector<4xf32>
      %14 = vector.shape_cast %13 : vector<4xf32> to vector<4x1xf32>
      %15 = tpu.reciprocal %14 : vector<4x1xf32> -> vector<4x1xf32>
      %16 = vector.broadcast %15 : vector<4x1xf32> to vector<4x4xf32>
      %17 = arith.mulf %12, %16 : vector<4x4xf32>
      %cst_10 = arith.constant dense<0xFF800000> : vector<4xf32>
      %18 = vector.multi_reduction <maximumf>, %17, %cst_10 [0] : vector<4x4xf32> to vector<4xf32>
      %19 = vector.shape_cast %18 : vector<4xf32> to vector<1x4xf32>
      %20 = vector.broadcast %19 : vector<1x4xf32> to vector<4x4xf32>
      %21 = arith.subf %17, %20 : vector<4x4xf32>
      %22 = math.exp %21 : vector<4x4xf32>
      %cst_11 = arith.constant dense<0.000000e+00> : vector<4xf32>
      %23 = vector.multi_reduction <add>, %22, %cst_11 [0] : vector<4x4xf32> to vector<4xf32>
      %24 = vector.shape_cast %23 : vector<4xf32> to vector<1x4xf32>
      %25 = math.log %24 : vector<1x4xf32>
      %26 = arith.addf %25, %19 : vector<1x4xf32>
      %27 = tpu.iota {dimensions = array<i32: 0>} : vector<4x4xi32>
      %28 = tpu.iota {dimensions = array<i32: 1>} : vector<4x4xi32>
      %29 = arith.cmpi eq, %27, %28 : vector<4x4xi32>
      %cst_12 = arith.constant 0.000000e+00 : f32
      %30 = vector.broadcast %cst_12 : f32 to vector<4x4xf32>
      %31 = arith.select %29, %17, %30 : vector<4x4xi1>, vector<4x4xf32>
      %32 = vector.shape_cast %31 : vector<4x4xf32> to vector<1x4x4xf32>
      %cst_13 = arith.constant dense<0.000000e+00> : vector<1xf32>
      %33 = vector.multi_reduction <add>, %32, %cst_13 [1, 2] : vector<1x4x4xf32> to vector<1xf32>
      %34 = vector.shape_cast %33 : vector<1xf32> to vector<1x1x1xf32>
      %35 = vector.extract %34[0, 0, 0] : f32 from vector<1x1x1xf32>
      %36 = vector.shape_cast %26 : vector<1x4xf32> to vector<1x1x4xf32>
      %cst_14 = arith.constant dense<0.000000e+00> : vector<1xf32>
      %37 = vector.multi_reduction <add>, %36, %cst_14 [1, 2] : vector<1x1x4xf32> to vector<1xf32>
      %38 = vector.shape_cast %37 : vector<1xf32> to vector<1x1x1xf32>
      %39 = vector.extract %38[0, 0, 0] : f32 from vector<1x1x1xf32>
      %40 = arith.subf %39, %35 : f32
      %41 = vector.broadcast %40 : f32 to vector<1x1x128xf32>
      %c0_15 = arith.constant 0 : index
      %c0_16 = arith.constant 0 : index
      %c0_17 = arith.constant 0 : index
      %42 = vector.load %arg3[%c0_15, %c0_16, %c0_17] : memref<1x1x128xf32, #tpu.memory_space<vmem>>, vector<1x1x128xf32>
      tpu.vector_store %arg3[%c0_15, %c0_16, %c0_17], %41 {strides = array<i32>} : memref<1x1x128xf32, #tpu.memory_space<vmem>>, vector<1x1x128xf32>,
    } else {
    }
    return
  }
  func.func @transform_0(%arg0: i32, %arg1: i32) -> (i32, i32, i32) {
    %c0_i32 = arith.constant 0 : i32
    %c0_i32_0 = arith.constant 0 : i32
    return %arg0, %c0_i32, %arg1 : i32, i32, i32
  }
  func.func @transform_1(%arg0: i32, %arg1: i32) -> (i32, i32, i32) {
    %c0_i32 = arith.constant 0 : i32
    %c0_i32_0 = arith.constant 0 : i32
    %c0_i32_1 = arith.constant 0 : i32
    return %arg0, %c0_i32, %c0_i32_0 : i32, i32, i32
  }
}

</mosaic_0001>

<llo_original>
// kernel: tpu_custom_call.1
$region0: #{tpu_custom_call.1}
  #allocation0 [shape = 'u32[]', space=smem, size = 0x4, offset = 0x4, fixed_abs, tag = 'smem constant byte address 0x4 - core index']
  #allocation1 [shape = 'u32[72,128]{1,0:T(1,128)}', space=vmem, size = 0x9000, scoped, tag = 'internal scratch']
  #allocation2 [shape = 'f32[4,4]{1,0:T(4,128)}', space=vmem, size = 0x800, scoped, tag = 'scratch operand']
  %s0 = inlined_call_operand.hbm [shape: f32[2,4,256], index: 0, kind: input, shape index: {}]
  %s1 = inlined_call_operand.hbm [shape: f32[2,1,128], index: 1, kind: output, shape index: {}]
  %s2 = sld [smem:[#allocation0]]
  $region53: #{tpu_custom_call.1} parent=0
    _
  %s4 = ssub.s32 1, %s2
  %s5 = scalar_select 0, %s4, %s2
  $region1: #{tpu_custom_call.1} parent=0
    #allocation3 [shape = 'u8[8192]{0}', space=vmem, size = 0x2000, scoped, tag = 'input window, operand 0']
    #allocation4 [shape = 's32[2]{0}', space=sflag, size = 0x8, scoped, tag = 'scoped memory for tpu_custom_call.1']
    #allocation5 [shape = 's32[2]{0}', space=sflag, size = 0x8, scoped, tag = 'scoped memory for tpu_custom_call.1']
    #allocation6 [shape = 'u8[1024]{0}', space=vmem, size = 0x400, scoped, tag = 'output window, operand 0']
    %6 = vsyncpa [#allocation4], 0
    %s7 = scalar_lea.sflag [#allocation4], 1
    %8 = vsyncpa %s7, 0
    %9 = vsyncpa [#allocation5], 0
    %s10 = scalar_lea.sflag [#allocation5], 1
    %11 = vsyncpa %s10, 0
    loop: start=0, step=1, limit=4
    $region2: #{tpu_custom_call.1} parent=1 // loop_pre_header
      _
    $region3: #{tpu_custom_call.1} parent=1 // loop_header
      %s13 = sphi 0, %s17
      %p14 = scmp.ge.s32.totalorder %s13, 4
      %s20 = sphi 0, %s32
      %s21 = sphi 0, %s28
      %s22 = sphi 0, %s20
      %s23 = sphi 0, %s21
      %s24 = sphi 0, %s22
      %s25 = sphi 0, %s23
      %s37 = sphi 0, %s39
      %s40 = sphi 0, %s37
      %s41 = sphi 0, %s40
      %s57 = sphi 0, %s41
      %s63 = sphi 0, %s65
      %s66 = sphi 0, %s63
      %s67 = sphi 0, %s66
      %s83 = sphi 0, %s67
    $region4: #{tpu_custom_call.1} parent=1 // loop_header_branch
      %16 = sbr.rel (%p14) target = $region8
    $region5: #{tpu_custom_call.1} parent=1 // loop_body
      %s18 = ssub.s32 %s13, 1
      %s19 = ssub.s32 %s13, 2
      %s26 = sadd.s32 1, %s21
      %p27 = scmp.ge.s32.totalorder %s26, 1
      %s28 = scalar_select %p27, 0, %s26
      %s29 = sadd.s32 1, %s20
      %s30 = scalar_select %p27, %s29, %s20
      %p31 = scmp.ge.s32.totalorder %s30, 2
      %s32 = scalar_select %p31, 0, %s30
      %s33 = ssub.s32 %s20, %s32
      %s34 = ssub.s32 %s21, %s28
      %s35 = sor.u32 %s33, %s34
      %p36 = scmp.eq.s32.totalorder %s35, 0
      %s38 = sadd.s32 %s37, 1
      %s39 = scalar_select %p36, %s37, %s38
      %p42 = pneg %p36
      %p43 = scmp.eq.s32.totalorder %s13, 1
      %p44 = por %p42, %p43
      %p45 = scmp.ne.s32.totalorder %s37, %s40
      %p46 = scmp.eq.s32.totalorder %s13, 0
      %p47 = por %p45, %p46
      %p48 = scmp.ne.s32.totalorder %s37, %s40
      %p49 = scmp.eq.s32.totalorder %s18, 1
      %p50 = por %p48, %p49
      %p51 = scmp.ne.s32.totalorder %s40, %s41
      %p52 = scmp.eq.s32.totalorder %s18, 0
      %p53 = por %p51, %p52
      %p54 = scmp.ne.s32.totalorder %s40, %s41
      %p55 = scmp.eq.s32.totalorder %s19, 1
      %p56 = por %p54, %p55
      %p58 = scmp.ne.s32.totalorder %s41, %s57
      %p59 = scmp.eq.s32.totalorder %s19, 0
      %p60 = por %p58, %p59
      %s61 = ssub.s32 %s20, %s32
      %p62 = scmp.eq.s32.totalorder %s61, 0
      %s64 = sadd.s32 %s63, 1
      %s65 = scalar_select %p62, %s63, %s64
      %p68 = pneg %p62
      %p69 = scmp.eq.s32.totalorder %s13, 1
      %p70 = por %p68, %p69
      %p71 = scmp.ne.s32.totalorder %s63, %s66
      %p72 = scmp.eq.s32.totalorder %s13, 0
      %p73 = por %p71, %p72
      %p74 = scmp.ne.s32.totalorder %s63, %s66
      %p75 = scmp.eq.s32.totalorder %s18, 1
      %p76 = por %p74, %p75
      %p77 = scmp.ne.s32.totalorder %s66, %s67
      %p78 = scmp.eq.s32.totalorder %s18, 0
      %p79 = por %p77, %p78
      %p80 = scmp.ne.s32.totalorder %s66, %s67
      %p81 = scmp.eq.s32.totalorder %s19, 1
      %p82 = por %p80, %p81
      %p84 = scmp.ne.s32.totalorder %s67, %s83
      %p85 = scmp.eq.s32.totalorder %s19, 0
      %p86 = por %p84, %p85
      %p87 = scmp.le.s32.totalorder 1, %s13
      %p88 = scmp.lt.s32.totalorder %s13, 3
      %p89 = pnand %p87, %p88
      %p90 = pneg %p89
      // Predicated region
      $region9: #{tpu_custom_call.1} parent=5 // pred_check
        _
      $region10: #{tpu_custom_call.1} parent=5 // pred_check_branch
        %92 = sbr.rel (%p89) target = $region12
      $region11: #{tpu_custom_call.1} parent=5 // pred_region
        %s93 = ssub.s32 %s13, 1
      $region12: #{tpu_custom_call.1} parent=5 // pred_fallthru
        _
      %p94 = scmp.lt.s32.totalorder %s13, 2
      // Predicated region
      $region13: #{tpu_custom_call.1} parent=5 // pred_check
        %p95 = pneg %p94
      $region14: #{tpu_custom_call.1} parent=5 // pred_check_branch
        %97 = sbr.rel (%p95) target = $region16
      $region15: #{tpu_custom_call.1} parent=5 // pred_region
        // Predicated region
        $region17: #{tpu_custom_call.1} parent=15 // pred_check
          %p98 = pneg %p47
        $region18: #{tpu_custom_call.1} parent=15 // pred_check_branch
          %100 = sbr.rel (%p98) target = $region20
        $region19: #{tpu_custom_call.1} parent=15 // pred_region
          %s101 = sand.u32 %s37, 1
          %s102 = scalar_lea.sflag [#allocation4], %s101
          %s103 = sand.u32 %s37, 1
          %s104 = smul.addr %s103, 8
          %s105 = scalar_lea.vmem [#allocation3], %s104
          %s106 = smul.u32 2, %s21
          %108 = vsyncadd %s102, 0
          %s109 = smul.addr %s20, 2
          %s110 = sadd.s32 %s106, %s109
          %s111 = smul.addr %s110, 4
          %s112 = scalar_lea.hbm %s0, %s111
          %s114 = sshll.u32 %s112, 4
          %s115 = int_to_ptr.hbm [resolvable:$true] %s114
          %s116 = sshll.u32 %s105, 4
          %s117 = int_to_ptr.vmem [resolvable:$true] %s116
          %119 = dma.hbm_to_vmem [thread:$0]  %s115, 128, %s117, %s102
        $region20: #{tpu_custom_call.1} parent=15 // pred_fallthru
          _
      $region16: #{tpu_custom_call.1} parent=5 // pred_fallthru
        _
      %p120 = scmp.le.s32.totalorder 1, %s13
      %p121 = scmp.lt.s32.totalorder %s13, 3
      %p122 = pnand %p120, %p121
      %p123 = pneg %p122
      // Predicated region
      $region21: #{tpu_custom_call.1} parent=5 // pred_check
        _
      $region22: #{tpu_custom_call.1} parent=5 // pred_check_branch
        %125 = sbr.rel (%p122) target = $region24
      $region23: #{tpu_custom_call.1} parent=5 // pred_region
        %s126 = ssub.s32 %s13, 1
        %s127 = sand.u32 %s40, 1
        %s128 = scalar_lea.sflag [#allocation4], %s127
        %s129 = sand.u32 %s40, 1
        %s130 = smul.addr %s129, 8
        %s131 = scalar_lea.vmem [#allocation3], %s130
        // Predicated region
        $region25: #{tpu_custom_call.1} parent=23 // pred_check
          %p132 = pneg %p53
        $region26: #{tpu_custom_call.1} parent=23 // pred_check_branch
          %134 = sbr.rel (%p132) target = $region28
        $region27: #{tpu_custom_call.1} parent=23 // pred_region
          %136 = dma.done %s128, 128
        $region28: #{tpu_custom_call.1} parent=23 // pred_fallthru
          _
        %s137 = sand.u32 %s40, 1
        %s138 = scalar_lea.sflag [#allocation4], %s137
        %s139 = sand.u32 %s40, 1
        %s140 = smul.addr %s139, 8
        %s141 = scalar_lea.vmem [#allocation3], %s140
        %p142 = pneg %p53
        %p143 = pneg %p50
        %p144 = pneg %p79
        %p145 = pneg %p76
        %s146 = sand.u32 %s66, 1
        %s147 = scalar_lea.sflag [#allocation5], %s146
        %s148 = sand.u32 %s66, 1
        %s149 = scalar_lea.vmem [#allocation6], %s148
        %s150 = smul.u32 2, %s23
        %v151 = vld [vmem:[%s131] sm:$0xff]
        %153 = vst [vmem:[#allocation1] ss:$2 sm:$0xff] %v151
        %v154 = vld.sshfl [vmem:[#allocation1] sm:$0xff pattern:$0x75316420]
        %v155 = vld.sshfl [vmem:[#allocation1 + $0x8] sm:$0xff pattern:$0x75316420]
        %158 = vst [vmem:[#allocation1] ss:$2 sm:$0xff] %v151
        %v159 = vld.sshfl [vmem:[#allocation1] sm:$0xff pattern:$0x75316420]
        %v160 = vld.sshfl [vmem:[#allocation1 + $0x8] sm:$0xff pattern:$0x75316420]
        %163 = vmatpush.xpose.msra.mxu0 0.0
        %164 = vmatpush.xpose.msra.mxu0 0.0
        %165 = vmatpush.xpose.msra.mxu0 0.0
        %166 = vmatpush.xpose.msra.mxu0 0.0
        %167 = vmatpush.xpose.msra.mxu0 0.0
        %168 = vmatpush.xpose.msra.mxu0 0.0
        %169 = vmatpush.xpose.msra.mxu0 0.0
        %170 = vmatpush.xpose.msra.mxu0 0.0
        %171 = vmatpush.xpose.msra.mxu0 0.0
        %172 = vmatpush.xpose.msra.mxu0 0.0
        %173 = vmatpush.xpose.msra.mxu0 0.0
        %174 = vmatpush.xpose.msra.mxu0 0.0
        %175 = vmatpush.xpose.msra.mxu0 0.0
        %176 = vmatpush.xpose.msra.mxu0 0.0
        %177 = vmatpush.xpose.msra.mxu0 0.0
        %178 = vmatpush.xpose.msra.mxu0 %v159
        %179 = vmatmul.f32.gmra.mxu0 %v154
        %v180 = vpop.f32.mrf.mxu0
        %v181 = vadd.f32 0.0, %v180
        %182 = vdwg.mxu0
        %183 = vmatpush.xpose.msra.mxu0 0.0
        %184 = vmatpush.xpose.msra.mxu0 0.0
        %185 = vmatpush.xpose.msra.mxu0 0.0
        %186 = vmatpush.xpose.msra.mxu0 0.0
        %187 = vmatpush.xpose.msra.mxu0 0.0
        %188 = vmatpush.xpose.msra.mxu0 0.0
        %189 = vmatpush.xpose.msra.mxu0 0.0
        %190 = vmatpush.xpose.msra.mxu0 0.0
        %191 = vmatpush.xpose.msra.mxu0 0.0
        %192 = vmatpush.xpose.msra.mxu0 0.0
        %193 = vmatpush.xpose.msra.mxu0 0.0
        %194 = vmatpush.xpose.msra.mxu0 0.0
        %195 = vmatpush.xpose.msra.mxu0 0.0
        %196 = vmatpush.xpose.msra.mxu0 0.0
        %197 = vmatpush.xpose.msra.mxu0 0.0
        %198 = vmatpush.xpose.msra.mxu0 %v160
        %199 = vmatmul.f32.gmra.mxu0 %v155
        %v200 = vpop.f32.mrf.mxu0
        %v201 = vadd.f32 %v181, %v200
        %202 = vdwg.mxu0
        %p203 = scmp.eq.s32.totalorder %s23, 0
        // Predicated region
        $region29: #{tpu_custom_call.1} parent=23 // pred_check
          %p204 = pneg %p203
        $region30: #{tpu_custom_call.1} parent=23 // pred_check_branch
          %206 = sbr.rel (%p204) target = $region32
        $region31: #{tpu_custom_call.1} parent=23 // pred_region
          %vm207 = vcmask 27648
          %208 = vst.msk [vmem:[#allocation2] sm:$0xf] %vm207, %v201
        $region32: #{tpu_custom_call.1} parent=23 // pred_fallthru
          _
        %p209 = scmp.gt.s32.totalorder %s23, 0
        // Predicated region
        $region33: #{tpu_custom_call.1} parent=23 // pred_check
          %p210 = pneg %p209
        $region34: #{tpu_custom_call.1} parent=23 // pred_check_branch
          %212 = sbr.rel (%p210) target = $region36
        $region35: #{tpu_custom_call.1} parent=23 // pred_region
          %v213 = vld [vmem:[#allocation2] sm:$0xf]
          %v214 = vadd.f32 %v213, %v201
          %vm215 = vcmask 27648
          %216 = vst.msk [vmem:[#allocation2] sm:$0xf] %vm215, %v214
        $region36: #{tpu_custom_call.1} parent=23 // pred_fallthru
          _
        // Predicated region
        $region37: #{tpu_custom_call.1} parent=23 // pred_check
          %p217 = pneg %p203
        $region38: #{tpu_custom_call.1} parent=23 // pred_check_branch
          %219 = sbr.rel (%p217) target = $region40
        $region39: #{tpu_custom_call.1} parent=23 // pred_region
          %v220 = vld [vmem:[#allocation2] sm:$0xf]
          %vm221 = vcmask 27648
          %v222 = vsel %vm221, %v220, -inf
          %223 = vmax.xlane.f32.xlu0 %v222
          %v224 = vpop.xlane.xlu0 %223
          %v225 = vrcp.pop %v224
          %v226 = vmul.f32 %v224, %v225
          %v227 = vsub.f32 1.0, %v226
          %v228 = vmul.f32 %v225, %v227
          %v229 = vadd.f32 %v225, %v228
          %vm230 = vweird.f32 %v224
          %vm231 = vweird.f32 %v225
          %vm232 = vmor %vm230, %vm231
          %v233 = vsel %vm232, %v225, %v229
          %v234 = vand.u32 2147483647, %v224
          %vm235 = vcmp.eq.f32.partialorder %v234, 8.507059e+37
          %v236 = vand.u32 %v224, 2147483648
          %v237 = vor.u32 1.1754944e-38, %v236
          %v238 = vsel %vm235, %v237, %v233
          %v239 = vmul.f32 %v220, %v238
          %v240 = vsel %vm221, %v239, -inf
          %v241 = vrot.slane %v240, 4
          %v242 = vmax.f32 %v240, %v241
          %v243 = vrot.slane %v242, 2
          %v244 = vmax.f32 %v242, %v243
          %v245 = vrot.slane %v244, 1
          %v246 = vmax.f32 %v244, %v245
          %v247 = vsub.f32 %v239, %v246
          %v248 = vmul.f32 %v247, 1.442695
          %v249 = vpow.pop %v248
          %v250 = vsel %vm221, %v249, 0.0
          %v251 = vrot.slane %v250, 4
          %v252 = vadd.f32 %v250, %v251
          %v253 = vrot.slane %v252, 2
          %v254 = vadd.f32 %v252, %v253
          %v255 = vrot.slane %v254, 1
          %v256 = vadd.f32 %v254, %v255
          %v257 = vlog2.pop %v256
          %v258 = vmul.f32 %v257, 0.6931472
          %v259 = vadd.f32 %v258, %v246
          %v260 = vlaneseq
          %v261 = vshrl.u32 %v260, 7
          %v262 = vlaneseq
          %v263 = vand.u32 %v262, 127
          %vm264 = vcmp.eq.s32.totalorder %v261, %v263
          %v265 = vsel %vm264, %v239, 0.0
          %v266 = vsel %vm221, %v265, 0.0
          %267 = vadd.xlane.f32.xlu0 %v266
          %v268 = vpop.xlane.xlu0 %267
          %v269 = vrot.slane %v268, 4
          %v270 = vadd.f32 %v268, %v269
          %v271 = vrot.slane %v270, 2
          %v272 = vadd.f32 %v270, %v271
          %v273 = vrot.slane %v272, 1
          %v274 = vadd.f32 %v272, %v273
          %s275 = vtos %v274
          %vm276 = vcmask 24576
          %v277 = vsel %vm276, %v259, 0.0
          %278 = vadd.xlane.f32.xlu0 %v277
          %v279 = vpop.xlane.xlu0 %278
          %v280 = vrot.slane %v279, 4
          %v281 = vadd.f32 %v279, %v280
          %v282 = vrot.slane %v281, 2
          %v283 = vadd.f32 %v281, %v282
          %v284 = vrot.slane %v283, 1
          %v285 = vadd.f32 %v283, %v284
          %s286 = vtos %v285
          %s287 = ssub.f32 %s286, %s275
          %v288 = vstv %s287
          %289 = vst [vmem:[%s149] sm:$0x1] %v288
        $region40: #{tpu_custom_call.1} parent=23 // pred_fallthru
          _
        %s290 = sand.u32 %s66, 1
        %s291 = scalar_lea.sflag [#allocation5], %s290
        %s292 = sand.u32 %s66, 1
        %s293 = scalar_lea.vmem [#allocation6], %s292
        // Predicated region
        $region41: #{tpu_custom_call.1} parent=23 // pred_check
          %p294 = pneg %p76
        $region42: #{tpu_custom_call.1} parent=23 // pred_check_branch
          %296 = sbr.rel (%p294) target = $region44
        $region43: #{tpu_custom_call.1} parent=23 // pred_region
          %298 = vsyncadd %s291, 0
          %s299 = scalar_lea.hbm %s1, %s22
          %s301 = sshll.u32 %s293, 4
          %s302 = int_to_ptr.vmem [resolvable:$true] %s301
          %s303 = sshll.u32 %s299, 4
          %s304 = int_to_ptr.hbm [resolvable:$true] %s303
          %306 = dma.vmem_to_hbm [thread:$0]  %s302, 16, %s304, %s291
        $region44: #{tpu_custom_call.1} parent=23 // pred_fallthru
          _
      $region24: #{tpu_custom_call.1} parent=5 // pred_fallthru
        _
      %p307 = scmp.le.s32.totalorder 2, %s13
      // Predicated region
      $region45: #{tpu_custom_call.1} parent=5 // pred_check
        %p308 = pneg %p307
      $region46: #{tpu_custom_call.1} parent=5 // pred_check_branch
        %310 = sbr.rel (%p308) target = $region48
      $region47: #{tpu_custom_call.1} parent=5 // pred_region
        %s311 = ssub.s32 %s13, 2
        // Predicated region
        $region49: #{tpu_custom_call.1} parent=47 // pred_check
          %p312 = pneg %p82
        $region50: #{tpu_custom_call.1} parent=47 // pred_check_branch
          %314 = sbr.rel (%p312) target = $region52
        $region51: #{tpu_custom_call.1} parent=47 // pred_region
          %s315 = sand.u32 %s67, 1
          %s316 = scalar_lea.sflag [#allocation5], %s315
          %s317 = sand.u32 %s67, 1
          %s318 = scalar_lea.vmem [#allocation6], %s317
          %320 = dma.done %s316, 16
        $region52: #{tpu_custom_call.1} parent=47 // pred_fallthru
          _
      $region48: #{tpu_custom_call.1} parent=5 // pred_fallthru
        _
    $region6: #{tpu_custom_call.1} parent=1 // loop_footer
      %s17 = sadd.s32 1, %s13
    $region7: #{tpu_custom_call.1} parent=1 // loop_footer_branch
      %12 = sbr.rel target = $region3
    $region8: #{tpu_custom_call.1} parent=1 // loop_exit
      _
    %321 = vsyncpa [#allocation4], 1
    %s322 = scalar_lea.sflag [#allocation4], 1
    %323 = vsyncpa %s322, 1
    %324 = vsyncpa [#allocation5], 1
    %s325 = scalar_lea.sflag [#allocation5], 1
    %326 = vsyncpa %s325, 1

</llo_original>
